<compile_context>
chip_gen: v5e
topology: v5e:2x2
jax: 0.10.0
libtpu: 0.0.40
codegen_flags: <defaults>
</compile_context>

<pallas_src>
import functools

import jax
import jax.numpy as jnp
from jax.experimental import pallas as pl
from jax.experimental.pallas import tpu as pltpu


def _torus_conv_kernel(x_ref, w_ref, b_ref, o_ref, *, B, H, W, KH, KW, C_out):
    """Single grid step for the whole batch.

    x_ref: [B, C_pad, H*W]          f32 (NCHW, spatial flattened -> lane-dense, C padded to 8)
    w_ref: [KH*C_out, KW*C_pad]     f32 (rows ordered (kernel_row a, c_out); cols (kernel_col b, c_in);
                                         BN scale folded)
    b_ref: [C_out, 1]               f32 (bias with BN folded)
    o_ref: [B, C_out, H*W]
    """
    HW = H * W
    BHW = B * HW
    ph, pw = KH // 2, KW // 2

    # Fold the batch onto the lane axis: [C_pad, B*HW].  Lane-aligned concat (HW = 2*128).
    x = jnp.concatenate([x_ref[b] for b in range(B)], axis=1)
    C_pad = x.shape[0]

    def fetch(arr, amount):
        # out[..., k] = arr[..., (k + amount) % N]   (flat circular shift along lanes, XLU)
        n = arr.shape[-1]
        amt = (-amount) % n
        if amt == 0:
            return arr
        return pltpu.roll(arr, shift=amt, axis=arr.ndim - 1)

    # Column index of each flattened position (W | HW | B*HW, so this is batch-safe).
    lane_in = jax.lax.broadcasted_iota(jnp.int32, (C_pad, BHW), 1)
    col = lane_in % W

    # Column-shifted copies of x with torus wrap along W.  The flat roll never needs to
    # wrap across batch/array boundaries at the positions that are kept, so batch folding
    # is safe here (both main and fix stay within the same image row).
    x_cols = []
    for s in range(-pw, pw + 1):
        if s == 0:
            x_cols.append(x)
            continue
        main = fetch(x, s)
        if s > 0:
            fix = fetch(x, s - W)
            keep = col < (W - s)
        else:
            fix = fetch(x, s + W)
            keep = col >= (-s)
        x_cols.append(jnp.where(keep, main, fix))

    # Small slab: rows ordered (kernel_col b, c_in), all pieces 8-row aligned.
    slab = jnp.concatenate(x_cols, axis=0)                       # [KW*C_pad, B*HW]

    # One MXU push for all KH kernel rows at once, f32 accumulation.
    z = jnp.dot(w_ref[...], slab,
                preferred_element_type=jnp.float32)              # [KH*C_out, B*HW]

    # Apply the per-kernel-row shift (a*W) on the small outputs and sum.
    # The shift is a multiple of W, so within a batch the flat roll IS the torus wrap
    # along H; only the fused-batch boundary needs a fix (main+fix select on q = pos % HW).
    q = jax.lax.broadcasted_iota(jnp.int32, (C_out, BHW), 1) % HW
    acc = z[ph * C_out:(ph + 1) * C_out, :]                      # a = 0 term (no shift)
    for a in range(-ph, ph + 1):
        if a == 0:
            continue
        za = z[(a + ph) * C_out:(a + ph + 1) * C_out, :]         # [C_out, B*HW]
        amount = a * W
        main = fetch(za, amount)
        if amount > 0:
            fixv = fetch(za, amount - HW)
            keep = q < (HW - amount)
        else:
            fixv = fetch(za, amount + HW)
            keep = q >= (-amount)
        acc = acc + jnp.where(keep, main, fixv)

    y = acc + b_ref[...]                                         # [C_out, B*HW] f32 epilogue
    for b in range(B):                                           # lane-dense stores (256 lanes)
        o_ref[b] = y[:, b * HW:(b + 1) * HW].astype(o_ref.dtype)


@jax.jit
def torus_conv2d(x, w, b, bn_params=None, eps=1e-5):
    """x: NCHW [B, C_in, H, W]; w: OIHW [C_out, C_in, KH, KW]; b: [C_out]."""
    B, C_in, H, W = x.shape
    C_out, _, KH, KW = w.shape
    HW = H * W
    C_pad = -(-C_in // 8) * 8                         # sublane-align the contraction channels

    # Fold eval-mode BatchNorm + bias into the conv weights (tiny, wrapper-side).
    if bn_params is not None:
        gamma, beta, mean, var = bn_params
        scale = gamma * jax.lax.rsqrt(var.astype(jnp.float32) + eps)
        w_f = w * scale[:, None, None, None]
        b_f = (b - mean) * scale + beta
    else:
        w_f, b_f = w, b

    # Weight: [C_out, C_in, KH, KW] -> pad C_in -> stack kernel rows:
    # w_stacked[a*C_out + co, bi*C_pad + c] = w_f[co, c, a, bi]
    if C_pad != C_in:
        w_f = jnp.pad(w_f, ((0, 0), (0, C_pad - C_in), (0, 0), (0, 0)))
    w_stacked = jnp.transpose(w_f, (2, 0, 3, 1)).reshape(KH * C_out, KW * C_pad)
    w_stacked = w_stacked.astype(jnp.float32)
    b_col = b_f.reshape(C_out, 1).astype(jnp.float32)

    # NCHW with spatial flattened (contiguous reshape, H*W lands on lanes); pad C to 8.
    x_flat = x.reshape(B, C_in, HW)
    if C_pad != C_in:
        x_flat = jnp.pad(x_flat, ((0, 0), (0, C_pad - C_in), (0, 0)))

    kern = functools.partial(_torus_conv_kernel, B=B, H=H, W=W, KH=KH, KW=KW, C_out=C_out)

    flops = 2 * B * C_out * HW * KH * KW * C_in
    bytes_accessed = (x_flat.size + w_stacked.size + b_col.size + B * C_out * HW) * 4

    out_flat = pl.pallas_call(
        kern,
        out_shape=jax.ShapeDtypeStruct((B, C_out, HW), x.dtype),
        grid=(1,),
        in_specs=[
            pl.BlockSpec((B, C_pad, HW), lambda i: (0, 0, 0)),
            pl.BlockSpec((KH * C_out, KW * C_pad), lambda i: (0, 0)),
            pl.BlockSpec((C_out, 1), lambda i: (0, 0)),
        ],
        out_specs=pl.BlockSpec((B, C_out, HW), lambda i: (0, 0, 0)),
        compiler_params=pltpu.CompilerParams(
            dimension_semantics=("arbitrary",)),
        cost_estimate=pl.CostEstimate(
            flops=flops, transcendentals=0, bytes_accessed=bytes_accessed),
    )(x_flat, w_stacked, b_col)

    return out_flat.reshape(B, C_out, H, W)


def _reference(x, w, b, bn_params, eps=1e-5):
    ph, pw = w.shape[2] // 2, w.shape[3] // 2
    xp = jnp.concatenate([x[:, :, :, -pw:], x, x[:, :, :, :pw]], axis=3)
    xp = jnp.concatenate([xp[:, :, -ph:], xp, xp[:, :, :ph]], axis=2)
    out = jax.lax.conv_general_dilated(
        xp, w, window_strides=(1, 1), padding='VALID',
        dimension_numbers=('NCHW', 'OIHW', 'NCHW'),
        precision=jax.lax.Precision.HIGHEST)
    out = out + b.reshape(1, -1, 1, 1)
    if bn_params is not None:
        g, bt, m, v = (p.reshape(1, -1, 1, 1) for p in bn_params)
        out = (out - m) / jnp.sqrt(v + eps) * g + bt
    return out


if __name__ == "__main__":
    key = jax.random.PRNGKey(0)
    k_x, k_w, k_b, k_g, k_bt, k_m, k_v = jax.random.split(key, 7)

    # TorusConv2d(input_dim=4, output_dim=8, kernel_size=(3, 3), bn=True)
    B, C_in, H, W = 2, 4, 16, 16
    C_out, KH, KW = 8, 3, 3

    x = jax.random.normal(k_x, (B, C_in, H, W), jnp.float32)
    w = jax.random.normal(k_w, (C_out, C_in, KH, KW), jnp.float32) * 0.1
    b = jax.random.normal(k_b, (C_out,), jnp.float32) * 0.1
    # Deterministic (non-trivial) BatchNorm eval-mode parameters.
    gamma = 1.0 + 0.1 * jax.random.normal(k_g, (C_out,), jnp.float32)
    beta = 0.1 * jax.random.normal(k_bt, (C_out,), jnp.float32)
    running_mean = 0.1 * jax.random.normal(k_m, (C_out,), jnp.float32)
    running_var = jax.random.uniform(k_v, (C_out,), jnp.float32, 0.5, 1.5)
    bn_params = (gamma, beta, running_mean, running_var)

    out = torus_conv2d(x, w, b, bn_params)
    out = jax.block_until_ready(out)

    ref = _reference(x, w, b, bn_params)
    assert out.shape == (B, C_out, H, W), out.shape
    max_err = float(jnp.max(jnp.abs(out - ref)))
    assert jnp.allclose(out, ref, atol=1e-2, rtol=1e-2), max_err

    print("KERNEL_OK")
</pallas_src>

<mosaic_0001>
module attributes {stable_mosaic.version = 11 : i64} {
  func.func @_torus_conv_kernel(%arg0: i32, %arg1: memref<2x8x256xf32, #tpu.memory_space<vmem>>, %arg2: memref<24x24xf32, #tpu.memory_space<vmem>>, %arg3: memref<8x1xf32, #tpu.memory_space<vmem>>, %arg4: memref<2x8x256xf32, #tpu.memory_space<vmem>>) attributes {dimension_semantics = [#tpu.dimension_semantics<arbitrary>], iteration_bounds = array<i64: 1>, scalar_prefetch = 0 : i64, scratch_operands = 0 : i64, tpu.core_type = #tpu.core_type<tc>, window_params = [{pipeline_mode = #tpu.pipeline_mode<synchronous>, transform_indices = @transform_0, window_bounds = array<i64: 2, 8, 256>}, {pipeline_mode = #tpu.pipeline_mode<synchronous>, transform_indices = @transform_1, window_bounds = array<i64: 24, 24>}, {pipeline_mode = #tpu.pipeline_mode<synchronous>, transform_indices = @transform_2, window_bounds = array<i64: 8, 1>}, {pipeline_mode = #tpu.pipeline_mode<synchronous>, transform_indices = @transform_3, window_bounds = array<i64: 2, 8, 256>}]} {
    %c0 = arith.constant 0 : index
    %c0_0 = arith.constant 0 : index
    %c0_1 = arith.constant 0 : index
    %0 = vector.load %arg1[%c0, %c0_0, %c0_1] : memref<2x8x256xf32, #tpu.memory_space<vmem>>, vector<1x8x256xf32>
    %1 = vector.shape_cast %0 : vector<1x8x256xf32> to vector<8x256xf32>
    %c1 = arith.constant 1 : index
    %c0_2 = arith.constant 0 : index
    %c0_3 = arith.constant 0 : index
    %2 = vector.load %arg1[%c1, %c0_2, %c0_3] : memref<2x8x256xf32, #tpu.memory_space<vmem>>, vector<1x8x256xf32>
    %3 = vector.shape_cast %2 : vector<1x8x256xf32> to vector<8x256xf32>
    %4 = tpu.concatenate %1, %3 in 1 : vector<8x256xf32>, vector<8x256xf32> -> vector<8x512xf32>
    %5 = tpu.iota {dimensions = array<i32: 1>} : vector<8x512xi32>
    %c16_i32 = arith.constant 16 : i32
    %c0_i32 = arith.constant 0 : i32
    %6 = arith.cmpi eq, %c16_i32, %c0_i32 : i32
    %c1_i32 = arith.constant 1 : i32
    %7 = arith.select %6, %c1_i32, %c16_i32 : i32
    %8 = vector.broadcast %7 : i32 to vector<8x512xi32>
    %9 = arith.remsi %5, %8 : vector<8x512xi32>
    %c0_i32_4 = arith.constant 0 : i32
    %10 = vector.broadcast %c0_i32_4 : i32 to vector<8x512xi32>
    %11 = arith.cmpi ne, %9, %10 : vector<8x512xi32>
    %c0_i32_5 = arith.constant 0 : i32
    %12 = vector.broadcast %c0_i32_5 : i32 to vector<8x512xi32>
    %13 = arith.cmpi slt, %9, %12 : vector<8x512xi32>
    %c0_i32_6 = arith.constant 0 : i32
    %14 = arith.cmpi slt, %7, %c0_i32_6 : i32
    %15 = vector.broadcast %14 : i1 to vector<8x512xi1>
    %16 = vector.broadcast %15 : vector<8x512xi1> to vector<8x512xi1>
    %17 = arith.xori %13, %16 : vector<8x512xi1>
    %18 = arith.andi %17, %11 : vector<8x512xi1>
    %19 = vector.broadcast %7 : i32 to vector<8x512xi32>
    %20 = arith.addi %9, %19 : vector<8x512xi32>
    %21 = arith.select %18, %20, %9 : vector<8x512xi1>, vector<8x512xi32>
    %c1_i32_7 = arith.constant 1 : i32
    %22 = tpu.dynamic_rotate %4 by %c1_i32_7 dim 1 : vector<8x512xf32>, i32 -> vector<8x512xf32>
    %c497_i32 = arith.constant 497 : i32
    %23 = tpu.dynamic_rotate %4 by %c497_i32 dim 1 : vector<8x512xf32>, i32 -> vector<8x512xf32>
    %c1_i32_8 = arith.constant 1 : i32
    %24 = vector.broadcast %c1_i32_8 : i32 to vector<8x512xi32>
    %25 = arith.cmpi sge, %21, %24 : vector<8x512xi32>
    %26 = arith.select %25, %22, %23 : vector<8x512xi1>, vector<8x512xf32>
    %c511_i32 = arith.constant 511 : i32
    %27 = tpu.dynamic_rotate %4 by %c511_i32 dim 1 : vector<8x512xf32>, i32 -> vector<8x512xf32>
    %c15_i32 = arith.constant 15 : i32
    %28 = tpu.dynamic_rotate %4 by %c15_i32 dim 1 : vector<8x512xf32>, i32 -> vector<8x512xf32>
    %c15_i32_9 = arith.constant 15 : i32
    %29 = vector.broadcast %c15_i32_9 : i32 to vector<8x512xi32>
    %30 = arith.cmpi slt, %21, %29 : vector<8x512xi32>
    %31 = arith.select %30, %27, %28 : vector<8x512xi1>, vector<8x512xf32>
    %32 = tpu.concatenate %26, %4, %31 in 0 : vector<8x512xf32>, vector<8x512xf32>, vector<8x512xf32> -> vector<24x512xf32>
    %c0_10 = arith.constant 0 : index
    %c0_11 = arith.constant 0 : index
    %33 = vector.load %arg2[%c0_10, %c0_11] : memref<24x24xf32, #tpu.memory_space<vmem>>, vector<24x24xf32>
    %cst = arith.constant dense<0.000000e+00> : vector<24x512xf32>
    %34 = tpu.matmul %33, %32, %cst {dimension_numbers = #tpu.dot_dimension_numbers<[1], [0], [0], [1], [0, 0, 1, 1], [], []>} : vector<24x24xf32>, vector<24x512xf32>, vector<24x512xf32> -> vector<24x512xf32>
    %35 = tpu.iota {dimensions = array<i32: 1>} : vector<8x512xi32>
    %c256_i32 = arith.constant 256 : i32
    %c0_i32_12 = arith.constant 0 : i32
    %36 = arith.cmpi eq, %c256_i32, %c0_i32_12 : i32
    %c1_i32_13 = arith.constant 1 : i32
    %37 = arith.select %36, %c1_i32_13, %c256_i32 : i32
    %38 = vector.broadcast %37 : i32 to vector<8x512xi32>
    %39 = arith.remsi %35, %38 : vector<8x512xi32>
    %c0_i32_14 = arith.constant 0 : i32
    %40 = vector.broadcast %c0_i32_14 : i32 to vector<8x512xi32>
    %41 = arith.cmpi ne, %39, %40 : vector<8x512xi32>
    %c0_i32_15 = arith.constant 0 : i32
    %42 = vector.broadcast %c0_i32_15 : i32 to vector<8x512xi32>
    %43 = arith.cmpi slt, %39, %42 : vector<8x512xi32>
    %c0_i32_16 = arith.constant 0 : i32
    %44 = arith.cmpi slt, %37, %c0_i32_16 : i32
    %45 = vector.broadcast %44 : i1 to vector<8x512xi1>
    %46 = vector.broadcast %45 : vector<8x512xi1> to vector<8x512xi1>
    %47 = arith.xori %43, %46 : vector<8x512xi1>
    %48 = arith.andi %47, %41 : vector<8x512xi1>
    %49 = vector.broadcast %37 : i32 to vector<8x512xi32>
    %50 = arith.addi %39, %49 : vector<8x512xi32>
    %51 = arith.select %48, %50, %39 : vector<8x512xi1>, vector<8x512xi32>
    %52 = vector.extract_strided_slice %34 {offsets = [8, 0], sizes = [8, 512], strides = [1, 1]} : vector<24x512xf32> to vector<8x512xf32>
    %53 = vector.extract_strided_slice %34 {offsets = [0, 0], sizes = [8, 512], strides = [1, 1]} : vector<24x512xf32> to vector<8x512xf32>
    %c16_i32_17 = arith.constant 16 : i32
    %54 = tpu.dynamic_rotate %53 by %c16_i32_17 dim 1 : vector<8x512xf32>, i32 -> vector<8x512xf32>
    %c272_i32 = arith.constant 272 : i32
    %55 = tpu.dynamic_rotate %53 by %c272_i32 dim 1 : vector<8x512xf32>, i32 -> vector<8x512xf32>
    %c16_i32_18 = arith.constant 16 : i32
    %56 = vector.broadcast %c16_i32_18 : i32 to vector<8x512xi32>
    %57 = arith.cmpi sge, %51, %56 : vector<8x512xi32>
    %58 = arith.select %57, %54, %55 : vector<8x512xi1>, vector<8x512xf32>
    %59 = arith.addf %52, %58 : vector<8x512xf32>
    %60 = vector.extract_strided_slice %34 {offsets = [16, 0], sizes = [8, 512], strides = [1, 1]} : vector<24x512xf32> to vector<8x512xf32>
    %c496_i32 = arith.constant 496 : i32
    %61 = tpu.dynamic_rotate %60 by %c496_i32 dim 1 : vector<8x512xf32>, i32 -> vector<8x512xf32>
    %c240_i32 = arith.constant 240 : i32
    %62 = tpu.dynamic_rotate %60 by %c240_i32 dim 1 : vector<8x512xf32>, i32 -> vector<8x512xf32>
    %c240_i32_19 = arith.constant 240 : i32
    %63 = vector.broadcast %c240_i32_19 : i32 to vector<8x512xi32>
    %64 = arith.cmpi slt, %51, %63 : vector<8x512xi32>
    %65 = arith.select %64, %61, %62 : vector<8x512xi1>, vector<8x512xf32>
    %66 = arith.addf %59, %65 : vector<8x512xf32>
    %c0_20 = arith.constant 0 : index
    %c0_21 = arith.constant 0 : index
    %67 = vector.load %arg3[%c0_20, %c0_21] : memref<8x1xf32, #tpu.memory_space<vmem>>, vector<8x1xf32>
    %68 = vector.broadcast %67 : vector<8x1xf32> to vector<8x512xf32>
    %69 = arith.addf %66, %68 : vector<8x512xf32>
    %70 = vector.extract_strided_slice %69 {offsets = [0, 0], sizes = [8, 256], strides = [1, 1]} : vector<8x512xf32> to vector<8x256xf32>
    %c0_22 = arith.constant 0 : index
    %c0_23 = arith.constant 0 : index
    %c0_24 = arith.constant 0 : index
    %71 = vector.load %arg4[%c0_22, %c0_23, %c0_24] : memref<2x8x256xf32, #tpu.memory_space<vmem>>, vector<1x8x256xf32>
    %72 = vector.shape_cast %71 : vector<1x8x256xf32> to vector<8x256xf32>
    %73 = vector.shape_cast %70 : vector<8x256xf32> to vector<1x8x256xf32>
    tpu.vector_store %arg4[%c0_22, %c0_23, %c0_24], %73 {strides = array<i32>} : memref<2x8x256xf32, #tpu.memory_space<vmem>>, vector<1x8x256xf32>,
    %74 = vector.extract_strided_slice %69 {offsets = [0, 256], sizes = [8, 256], strides = [1, 1]} : vector<8x512xf32> to vector<8x256xf32>
    %c1_25 = arith.constant 1 : index
    %c0_26 = arith.constant 0 : index
    %c0_27 = arith.constant 0 : index
    %75 = vector.load %arg4[%c1_25, %c0_26, %c0_27] : memref<2x8x256xf32, #tpu.memory_space<vmem>>, vector<1x8x256xf32>
    %76 = vector.shape_cast %75 : vector<1x8x256xf32> to vector<8x256xf32>
    %77 = vector.shape_cast %74 : vector<8x256xf32> to vector<1x8x256xf32>
    tpu.vector_store %arg4[%c1_25, %c0_26, %c0_27], %77 {strides = array<i32>} : memref<2x8x256xf32, #tpu.memory_space<vmem>>, vector<1x8x256xf32>,
    return
  }
  func.func @transform_0(%arg0: i32) -> (i32, i32, i32) {
    %c0_i32 = arith.constant 0 : i32
    %c0_i32_0 = arith.constant 0 : i32
    %c0_i32_1 = arith.constant 0 : i32
    %c0_i32_2 = arith.constant 0 : i32
    return %c0_i32, %c0_i32_0, %c0_i32_1 : i32, i32, i32
  }
  func.func @transform_1(%arg0: i32) -> (i32, i32) {
    %c0_i32 = arith.constant 0 : i32
    %c0_i32_0 = arith.constant 0 : i32
    %c0_i32_1 = arith.constant 0 : i32
    return %c0_i32, %c0_i32_0 : i32, i32
  }
  func.func @transform_2(%arg0: i32) -> (i32, i32) {
    %c0_i32 = arith.constant 0 : i32
    %c0_i32_0 = arith.constant 0 : i32
    %c0_i32_1 = arith.constant 0 : i32
    return %c0_i32, %c0_i32_0 : i32, i32
  }
  func.func @transform_3(%arg0: i32) -> (i32, i32, i32) {
    %c0_i32 = arith.constant 0 : i32
    %c0_i32_0 = arith.constant 0 : i32
    %c0_i32_1 = arith.constant 0 : i32
    %c0_i32_2 = arith.constant 0 : i32
    return %c0_i32, %c0_i32_0, %c0_i32_1 : i32, i32, i32
  }
}

</mosaic_0001>

<llo_original>
// kernel: torus_conv2d.1
$region0: #{torus_conv2d.1}
  #allocation0 [shape = 'u32[]', space=smem, size = 0x4, offset = 0x4, fixed_abs, tag = 'smem constant byte address 0x4 - core index']
  #allocation1 [shape = 'u32[72,128]{1,0:T(1,128)}', space=vmem, size = 0x9000, scoped, tag = 'internal scratch']
  %s0 = inlined_call_operand.vmem [shape: f32[2,8,256], index: 0, kind: input, shape index: {}]
  %s1 = inlined_call_operand.vmem [shape: f32[24,24], index: 1, kind: input, shape index: {}]
  %s2 = inlined_call_operand.vmem [shape: f32[8,1], index: 2, kind: input, shape index: {}]
  %s3 = inlined_call_operand.vmem [shape: f32[2,8,256], index: 3, kind: output, shape index: {}]
  %s4 = sld [smem:[#allocation0]]
  $region22: #{torus_conv2d.1} parent=0
    _
  %s6 = ssub.s32 1, %s4
  %s7 = scalar_select 0, %s6, %s4
  // Predicated region
  $region2: #{torus_conv2d.1} parent=0 // pred_check
    _
  $region3: #{torus_conv2d.1} parent=0 // pred_check_branch
    %9 = sbr.rel (0) target = $region5
  $region4: #{torus_conv2d.1} parent=0 // pred_region
    _
  $region5: #{torus_conv2d.1} parent=0 // pred_fallthru
    _
  // Predicated region
  $region6: #{torus_conv2d.1} parent=0 // pred_check
    _
  $region7: #{torus_conv2d.1} parent=0 // pred_check_branch
    %11 = sbr.rel (0) target = $region9
  $region8: #{torus_conv2d.1} parent=0 // pred_region
    _
  $region9: #{torus_conv2d.1} parent=0 // pred_fallthru
    _
  // Predicated region
  $region10: #{torus_conv2d.1} parent=0 // pred_check
    _
  $region11: #{torus_conv2d.1} parent=0 // pred_check_branch
    %13 = sbr.rel (0) target = $region13
  $region12: #{torus_conv2d.1} parent=0 // pred_region
    _
  $region13: #{torus_conv2d.1} parent=0 // pred_fallthru
    _
  %v14 = vld [vmem:[%s0] sm:$0xff]
  %v15 = vld [vmem:[%s0 + $0x8] sm:$0xff]
  %s16 = scalar_lea.vmem %s0, 16
  %v17 = vld [vmem:[%s16] sm:$0xff]
  %v18 = vld [vmem:[%s16 + $0x8] sm:$0xff]
  %v19 = vlaneseq
  %v20 = vand.u32 %v19, 127
  %v21 = vadd.s32 %v20, 128
  %v22 = vadd.s32 %v20, 256
  %v23 = vadd.s32 %v20, 384
  %vm24 = vcmp.lt.s32.totalorder %v20, 0
  %v25 = vsub.s32 0, %v20
  %v26 = vsel %vm24, %v25, %v20
  %v27 = vshrl.u32 %v26, 4
  %v28 = vand.u32 %v26, 15
  %v29 = vsub.s32 0, %v28
  %v30 = vsel %vm24, %v29, %v28
  %vm31 = vcmp.lt.s32.totalorder %v21, 0
  %v32 = vsub.s32 0, %v21
  %v33 = vsel %vm31, %v32, %v21
  %v34 = vshrl.u32 %v33, 4
  %v35 = vand.u32 %v33, 15
  %v36 = vsub.s32 0, %v35
  %v37 = vsel %vm31, %v36, %v35
  %vm38 = vcmp.lt.s32.totalorder %v22, 0
  %v39 = vsub.s32 0, %v22
  %v40 = vsel %vm38, %v39, %v22
  %v41 = vshrl.u32 %v40, 4
  %v42 = vand.u32 %v40, 15
  %v43 = vsub.s32 0, %v42
  %v44 = vsel %vm38, %v43, %v42
  %vm45 = vcmp.lt.s32.totalorder %v23, 0
  %v46 = vsub.s32 0, %v23
  %v47 = vsel %vm45, %v46, %v23
  %v48 = vshrl.u32 %v47, 4
  %v49 = vand.u32 %v47, 15
  %v50 = vsub.s32 0, %v49
  %v51 = vsel %vm45, %v50, %v49
  %vm52 = vcmp.ne.s32.totalorder %v30, 0
  %vm53 = vcmp.ne.s32.totalorder %v37, 0
  %vm54 = vcmp.ne.s32.totalorder %v44, 0
  %vm55 = vcmp.ne.s32.totalorder %v51, 0
  %vm56 = vcmp.lt.s32.totalorder %v30, 0
  %vm57 = vcmp.lt.s32.totalorder %v37, 0
  %vm58 = vcmp.lt.s32.totalorder %v44, 0
  %vm59 = vcmp.lt.s32.totalorder %v51, 0
  %vm60 = vmand %vm56, %vm52
  %vm61 = vmand %vm57, %vm53
  %vm62 = vmand %vm58, %vm54
  %vm63 = vmand %vm59, %vm55
  %v64 = vadd.s32 %v30, 16
  %v65 = vadd.s32 %v37, 16
  %v66 = vadd.s32 %v44, 16
  %v67 = vadd.s32 %v51, 16
  %v68 = vsel %vm60, %v64, %v30
  %v69 = vsel %vm61, %v65, %v37
  %v70 = vsel %vm62, %v66, %v44
  %v71 = vsel %vm63, %v67, %v51
  %72 = vrot.lane.b32.xlu0 %v14, 1
  %v73 = vpop.permute.xlu0 %72
  %74 = vrot.lane.b32.xlu0 %v15, 1
  %v75 = vpop.permute.xlu0 %74
  %76 = vrot.lane.b32.xlu0 %v17, 1
  %v77 = vpop.permute.xlu0 %76
  %78 = vrot.lane.b32.xlu0 %v18, 1
  %v79 = vpop.permute.xlu0 %78
  %vm80 = vcmp.lt.s32.totalorder %v20, 1
  %v81 = vsel %vm80, %v77, %v79
  %v82 = vsel %vm80, %v75, %v77
  %v83 = vsel %vm80, %v73, %v75
  %v84 = vsel %vm80, %v79, %v73
  %85 = vrot.lane.b32.xlu0 %v14, 113
  %v86 = vpop.permute.xlu0 %85
  %87 = vrot.lane.b32.xlu0 %v15, 113
  %v88 = vpop.permute.xlu0 %87
  %89 = vrot.lane.b32.xlu0 %v17, 113
  %v90 = vpop.permute.xlu0 %89
  %91 = vrot.lane.b32.xlu0 %v18, 113
  %v92 = vpop.permute.xlu0 %91
  %vm93 = vcmp.lt.s32.totalorder %v20, 113
  %v94 = vsel %vm93, %v90, %v92
  %v95 = vsel %vm93, %v88, %v90
  %v96 = vsel %vm93, %v86, %v88
  %v97 = vsel %vm93, %v92, %v86
  %vm98 = vcmp.ge.s32.totalorder %v68, 1
  %vm99 = vcmp.ge.s32.totalorder %v69, 1
  %vm100 = vcmp.ge.s32.totalorder %v70, 1
  %vm101 = vcmp.ge.s32.totalorder %v71, 1
  %v102 = vsel %vm98, %v84, %v96
  %v103 = vsel %vm99, %v83, %v95
  %v104 = vsel %vm100, %v82, %v94
  %v105 = vsel %vm101, %v81, %v97
  %106 = vrot.lane.b32.xlu0 %v14, 127
  %v107 = vpop.permute.xlu0 %106
  %108 = vrot.lane.b32.xlu0 %v15, 127
  %v109 = vpop.permute.xlu0 %108
  %110 = vrot.lane.b32.xlu0 %v17, 127
  %v111 = vpop.permute.xlu0 %110
  %112 = vrot.lane.b32.xlu0 %v18, 127
  %v113 = vpop.permute.xlu0 %112
  %vm114 = vcmp.lt.s32.totalorder %v20, 127
  %v115 = vsel %vm114, %v111, %v113
  %v116 = vsel %vm114, %v109, %v111
  %v117 = vsel %vm114, %v107, %v109
  %v118 = vsel %vm114, %v113, %v107
  %119 = vrot.lane.b32.xlu0 %v14, 15
  %v120 = vpop.permute.xlu0 %119
  %121 = vrot.lane.b32.xlu0 %v15, 15
  %v122 = vpop.permute.xlu0 %121
  %123 = vrot.lane.b32.xlu0 %v17, 15
  %v124 = vpop.permute.xlu0 %123
  %125 = vrot.lane.b32.xlu0 %v18, 15
  %v126 = vpop.permute.xlu0 %125
  %vm127 = vcmp.lt.s32.totalorder %v20, 15
  %v128 = vsel %vm127, %v124, %v126
  %v129 = vsel %vm127, %v122, %v124
  %v130 = vsel %vm127, %v120, %v122
  %v131 = vsel %vm127, %v126, %v120
  %vm132 = vcmp.lt.s32.totalorder %v68, 15
  %vm133 = vcmp.lt.s32.totalorder %v69, 15
  %vm134 = vcmp.lt.s32.totalorder %v70, 15
  %vm135 = vcmp.lt.s32.totalorder %v71, 15
  %v136 = vsel %vm132, %v117, %v131
  %v137 = vsel %vm133, %v116, %v130
  %v138 = vsel %vm134, %v115, %v129
  %v139 = vsel %vm135, %v118, %v128
  %v140 = vld [vmem:[%s1] sm:$0xff]
  %v141 = vld [vmem:[%s1 + $0x8] sm:$0xff]
  %v142 = vld [vmem:[%s1 + $0x10] sm:$0xff]
  %vm143 = vcmask 195584
  %v145 = vsel %vm143, %v140, 0
  %v148 = vsel %vm143, %v141, 0
  %v151 = vsel %vm143, %v142, 0
  %153 = vmatpush.msra.mxu0 0.0
  %154 = vmatpush.msra.mxu0 0.0
  %155 = vmatpush.msra.mxu0 0.0
  %156 = vmatpush.msra.mxu0 0.0
  %157 = vmatpush.msra.mxu0 0.0
  %158 = vmatpush.msra.mxu0 0.0
  %159 = vmatpush.msra.mxu0 0.0
  %160 = vmatpush.msra.mxu0 0.0
  %161 = vmatpush.msra.mxu0 0.0
  %162 = vmatpush.msra.mxu0 0.0
  %163 = vmatpush.msra.mxu0 0.0
  %164 = vmatpush.msra.mxu0 0.0
  %165 = vmatpush.msra.mxu0 0.0
  %166 = vmatpush.msra.mxu0 %v136
  %167 = vmatpush.msra.mxu0 %v14
  %168 = vmatpush.msra.mxu0 %v102
  %169 = vmatmul.f32.gmra.mxu0 %v145
  %v170 = vpop.f32.mrf.mxu0
  %v171 = vadd.f32 0.0, %v170
  %172 = vmatmul.f32.gmra.mxu0 %v148
  %v173 = vpop.f32.mrf.mxu0
  %v174 = vadd.f32 0.0, %v173
  %175 = vmatmul.f32.gmra.mxu0 %v151
  %v176 = vpop.f32.mrf.mxu0
  %v177 = vadd.f32 0.0, %v176
  %178 = vdwg.mxu0
  %179 = vmatpush.msra.mxu0 0.0
  %180 = vmatpush.msra.mxu0 0.0
  %181 = vmatpush.msra.mxu0 0.0
  %182 = vmatpush.msra.mxu0 0.0
  %183 = vmatpush.msra.mxu0 0.0
  %184 = vmatpush.msra.mxu0 0.0
  %185 = vmatpush.msra.mxu0 0.0
  %186 = vmatpush.msra.mxu0 0.0
  %187 = vmatpush.msra.mxu0 0.0
  %188 = vmatpush.msra.mxu0 0.0
  %189 = vmatpush.msra.mxu0 0.0
  %190 = vmatpush.msra.mxu0 0.0
  %191 = vmatpush.msra.mxu0 0.0
  %192 = vmatpush.msra.mxu0 %v137
  %193 = vmatpush.msra.mxu0 %v15
  %194 = vmatpush.msra.mxu0 %v103
  %195 = vmatmul.f32.gmra.mxu0 %v145
  %v196 = vpop.f32.mrf.mxu0
  %v197 = vadd.f32 0.0, %v196
  %198 = vmatmul.f32.gmra.mxu0 %v148
  %v199 = vpop.f32.mrf.mxu0
  %v200 = vadd.f32 0.0, %v199
  %201 = vmatmul.f32.gmra.mxu0 %v151
  %v202 = vpop.f32.mrf.mxu0
  %v203 = vadd.f32 0.0, %v202
  %204 = vdwg.mxu0
  %205 = vmatpush.msra.mxu0 0.0
  %206 = vmatpush.msra.mxu0 0.0
  %207 = vmatpush.msra.mxu0 0.0
  %208 = vmatpush.msra.mxu0 0.0
  %209 = vmatpush.msra.mxu0 0.0
  %210 = vmatpush.msra.mxu0 0.0
  %211 = vmatpush.msra.mxu0 0.0
  %212 = vmatpush.msra.mxu0 0.0
  %213 = vmatpush.msra.mxu0 0.0
  %214 = vmatpush.msra.mxu0 0.0
  %215 = vmatpush.msra.mxu0 0.0
  %216 = vmatpush.msra.mxu0 0.0
  %217 = vmatpush.msra.mxu0 0.0
  %218 = vmatpush.msra.mxu0 %v138
  %219 = vmatpush.msra.mxu0 %v17
  %220 = vmatpush.msra.mxu0 %v104
  %221 = vmatmul.f32.gmra.mxu0 %v145
  %v222 = vpop.f32.mrf.mxu0
  %v223 = vadd.f32 0.0, %v222
  %224 = vmatmul.f32.gmra.mxu0 %v148
  %v225 = vpop.f32.mrf.mxu0
  %v226 = vadd.f32 0.0, %v225
  %227 = vmatmul.f32.gmra.mxu0 %v151
  %v228 = vpop.f32.mrf.mxu0
  %v229 = vadd.f32 0.0, %v228
  %230 = vdwg.mxu0
  %231 = vmatpush.msra.mxu0 0.0
  %232 = vmatpush.msra.mxu0 0.0
  %233 = vmatpush.msra.mxu0 0.0
  %234 = vmatpush.msra.mxu0 0.0
  %235 = vmatpush.msra.mxu0 0.0
  %236 = vmatpush.msra.mxu0 0.0
  %237 = vmatpush.msra.mxu0 0.0
  %238 = vmatpush.msra.mxu0 0.0
  %239 = vmatpush.msra.mxu0 0.0
  %240 = vmatpush.msra.mxu0 0.0
  %241 = vmatpush.msra.mxu0 0.0
  %242 = vmatpush.msra.mxu0 0.0
  %243 = vmatpush.msra.mxu0 0.0
  %244 = vmatpush.msra.mxu0 %v139
  %245 = vmatpush.msra.mxu0 %v18
  %246 = vmatpush.msra.mxu0 %v105
  %247 = vmatmul.f32.gmra.mxu0 %v145
  %v248 = vpop.f32.mrf.mxu0
  %v249 = vadd.f32 0.0, %v248
  %250 = vmatmul.f32.gmra.mxu0 %v148
  %v251 = vpop.f32.mrf.mxu0
  %v252 = vadd.f32 0.0, %v251
  %253 = vmatmul.f32.gmra.mxu0 %v151
  %v254 = vpop.f32.mrf.mxu0
  %v255 = vadd.f32 0.0, %v254
  %256 = vdwg.mxu0
  %vm257 = vcmp.lt.s32.totalorder %v20, 0
  %v258 = vsub.s32 0, %v20
  %v259 = vsel %vm257, %v258, %v20
  %v260 = vshrl.u32 %v259, 8
  %v261 = vand.u32 %v259, 255
  %v262 = vsub.s32 0, %v261
  %v263 = vsel %vm257, %v262, %v261
  %vm264 = vcmp.lt.s32.totalorder %v21, 0
  %v265 = vsub.s32 0, %v21
  %v266 = vsel %vm264, %v265, %v21
  %v267 = vshrl.u32 %v266, 8
  %v268 = vand.u32 %v266, 255
  %v269 = vsub.s32 0, %v268
  %v270 = vsel %vm264, %v269, %v268
  %vm271 = vcmp.lt.s32.totalorder %v22, 0
  %v272 = vsub.s32 0, %v22
  %v273 = vsel %vm271, %v272, %v22
  %v274 = vshrl.u32 %v273, 8
  %v275 = vand.u32 %v273, 255
  %v276 = vsub.s32 0, %v275
  %v277 = vsel %vm271, %v276, %v275
  %vm278 = vcmp.lt.s32.totalorder %v23, 0
  %v279 = vsub.s32 0, %v23
  %v280 = vsel %vm278, %v279, %v23
  %v281 = vshrl.u32 %v280, 8
  %v282 = vand.u32 %v280, 255
  %v283 = vsub.s32 0, %v282
  %v284 = vsel %vm278, %v283, %v282
  %vm285 = vcmp.ne.s32.totalorder %v263, 0
  %vm286 = vcmp.ne.s32.totalorder %v270, 0
  %vm287 = vcmp.ne.s32.totalorder %v277, 0
  %vm288 = vcmp.ne.s32.totalorder %v284, 0
  %vm289 = vcmp.lt.s32.totalorder %v263, 0
  %vm290 = vcmp.lt.s32.totalorder %v270, 0
  %vm291 = vcmp.lt.s32.totalorder %v277, 0
  %vm292 = vcmp.lt.s32.totalorder %v284, 0
  %vm293 = vmand %vm289, %vm285
  %vm294 = vmand %vm290, %vm286
  %vm295 = vmand %vm291, %vm287
  %vm296 = vmand %vm292, %vm288
  %v297 = vadd.s32 %v263, 256
  %v298 = vadd.s32 %v270, 256
  %v299 = vadd.s32 %v277, 256
  %v300 = vadd.s32 %v284, 256
  %v301 = vsel %vm293, %v297, %v263
  %v302 = vsel %vm294, %v298, %v270
  %v303 = vsel %vm295, %v299, %v277
  %v304 = vsel %vm296, %v300, %v284
  %305 = vrot.lane.b32.xlu0 %v171, 16
  %v306 = vpop.permute.xlu0 %305
  %307 = vrot.lane.b32.xlu0 %v197, 16
  %v308 = vpop.permute.xlu0 %307
  %309 = vrot.lane.b32.xlu0 %v223, 16
  %v310 = vpop.permute.xlu0 %309
  %311 = vrot.lane.b32.xlu0 %v249, 16
  %v312 = vpop.permute.xlu0 %311
  %vm313 = vcmp.lt.s32.totalorder %v20, 16
  %v314 = vsel %vm313, %v310, %v312
  %v315 = vsel %vm313, %v308, %v310
  %v316 = vsel %vm313, %v306, %v308
  %v317 = vsel %vm313, %v312, %v306
  %vm318 = vcmp.ge.s32.totalorder %v301, 16
  %vm319 = vcmp.ge.s32.totalorder %v302, 16
  %vm320 = vcmp.ge.s32.totalorder %v303, 16
  %vm321 = vcmp.ge.s32.totalorder %v304, 16
  %v322 = vsel %vm318, %v317, %v315
  %v323 = vsel %vm319, %v316, %v314
  %v324 = vsel %vm320, %v315, %v317
  %v325 = vsel %vm321, %v314, %v316
  %v326 = vadd.f32 %v174, %v322
  %v327 = vadd.f32 %v200, %v323
  %v328 = vadd.f32 %v226, %v324
  %v329 = vadd.f32 %v252, %v325
  %330 = vrot.lane.b32.xlu0 %v177, 112
  %v331 = vpop.permute.xlu0 %330
  %332 = vrot.lane.b32.xlu0 %v203, 112
  %v333 = vpop.permute.xlu0 %332
  %334 = vrot.lane.b32.xlu0 %v229, 112
  %v335 = vpop.permute.xlu0 %334
  %336 = vrot.lane.b32.xlu0 %v255, 112
  %v337 = vpop.permute.xlu0 %336
  %vm338 = vcmp.lt.s32.totalorder %v20, 112
  %v339 = vsel %vm338, %v335, %v337
  %v340 = vsel %vm338, %v333, %v335
  %v341 = vsel %vm338, %v331, %v333
  %v342 = vsel %vm338, %v337, %v331
  %vm343 = vcmp.lt.s32.totalorder %v301, 240
  %vm344 = vcmp.lt.s32.totalorder %v302, 240
  %vm345 = vcmp.lt.s32.totalorder %v303, 240
  %vm346 = vcmp.lt.s32.totalorder %v304, 240
  %v347 = vsel %vm343, %v341, %v339
  %v348 = vsel %vm344, %v340, %v342
  %v349 = vsel %vm345, %v339, %v341
  %v350 = vsel %vm346, %v342, %v340
  %v351 = vadd.f32 %v326, %v347
  %v352 = vadd.f32 %v327, %v348
  %v353 = vadd.f32 %v328, %v349
  %v354 = vadd.f32 %v329, %v350
  %v355 = vld [vmem:[%s2] sm:$0xff]
  %357 = vset.pattern.permute.xlu0 0
  %358 = vperm.xlu0 %357, %v355
  %v359 = vpop.permute.xlu0 %358
  %v361 = vadd.f32 %v351, %v359
  %v362 = vadd.f32 %v352, %v359
  %v363 = vadd.f32 %v353, %v359
  %v364 = vadd.f32 %v354, %v359
  %365 = vst [vmem:[%s3] sm:$0xff] %v361
  %366 = vst [vmem:[%s3 + $0x8] sm:$0xff] %v362
  %s367 = scalar_lea.vmem %s3, 16
  %368 = vst [vmem:[%s367] sm:$0xff] %v363
  %369 = vst [vmem:[%s367 + $0x8] sm:$0xff] %v364
  // Predicated region
  $region14: #{torus_conv2d.1} parent=0 // pred_check
    _
  $region15: #{torus_conv2d.1} parent=0 // pred_check_branch
    %371 = sbr.rel (0) target = $region17
  $region16: #{torus_conv2d.1} parent=0 // pred_region
    _
  $region17: #{torus_conv2d.1} parent=0 // pred_fallthru
    _
  // Predicated region
  $region18: #{torus_conv2d.1} parent=0 // pred_check
    _
  $region19: #{torus_conv2d.1} parent=0 // pred_check_branch
    %373 = sbr.rel (0) target = $region21
  $region20: #{torus_conv2d.1} parent=0 // pred_region
    _
  $region21: #{torus_conv2d.1} parent=0 // pred_fallthru
    _

</llo_original>
